<compile_context>
chip_gen: v6e
topology: v6e:2x2x1
jax: 0.10.0
libtpu: 0.0.40
codegen_flags: <defaults>
</compile_context>

<pallas_src>
import functools

import jax
import jax.numpy as jnp
from jax import lax
from jax.experimental import pallas as pl
from jax.experimental.pallas import tpu as pltpu


_TARGET_STEP_BYTES = 4 << 20          # ~4 MiB of input DMA per grid step
_VMEM_BUFFER_BUDGET = 36 << 20        # double-buffered inputs + f32 temporaries
_VMEM_LIMIT_BYTES = 48 << 20          # <= 48 MiB: safe on v7x (64 MiB physical)


def _round_up(x, m):
    return ((x + m - 1) // m) * m


def _log_sigmoid(x):
    # numerically stable: logsigmoid(x) = min(x, 0) - log1p(exp(-|x|))
    return jnp.minimum(x, 0.0) - jnp.log1p(jnp.exp(-jnp.abs(x)))


def _choose_tb(B, C, N, D, itemsize, tb_max=None):
    """Pick the batch tile (multiple of 8) by bytes per step, not a fixed cap."""
    per_row_in = (C + N + 1) * D * itemsize    # HBM bytes DMA'd per batch row
    per_row_f32 = (C + N) * D * 4              # f32 promote working set per row

    # Byte target for one grid step.
    tb = max(8, ((_TARGET_STEP_BYTES // max(per_row_in, 1)) // 8) * 8)

    # VMEM cap: 2x (double-buffered) input tiles + f32 compute temporaries.
    vmem_cap_rows = _VMEM_BUFFER_BUDGET // max(2 * per_row_in + per_row_f32, 1)
    tb = min(tb, max(8, (vmem_cap_rows // 8) * 8))

    # Never larger than the (8-rounded) batch, honor user cap as a multiple of 8.
    tb = min(tb, _round_up(B, 8))
    if tb_max is not None:
        tb = min(tb, max(8, (int(tb_max) // 8) * 8))

    # Prefer >= ~4 grid steps (pipeline depth / megacore), as long as each step
    # still moves >= ~512 KiB of input.
    if B > tb:
        depth_tb = _round_up(pl.cdiv(B, 4), 8)
        if depth_tb * per_row_in >= (512 << 10):
            tb = min(tb, depth_tb)

    return max(8, (tb // 8) * 8)


def _make_nsloss_kernel(true_b, tb, c, n):
    def kernel(ctx_ref, neg_ref, tgt_ref, out_ref):
        # Promote to f32 in-kernel (mandatory for bf16 inputs on v5e's VPU).
        # NOTE: kept as a whole-tile expression; Mosaic fuses the cast into the
        # multiply on current toolchains.  If a v5e bundle dump ever shows a
        # materialized f32 copy of the (TB,C,D)/(TB,N,D) tiles, strip-mine this
        # multiply+reduce over sublane chunks instead.
        ctx = ctx_ref[...].astype(jnp.float32)   # (TB, C, D)
        neg = neg_ref[...].astype(jnp.float32)   # (TB, N, D)
        tgt = tgt_ref[...].astype(jnp.float32)   # (TB, D)

        tgt3 = tgt[:, None, :]                   # (TB, 1, D) sublane-broadcast

        # Per-row dot products against the target (VPU multiply + XLU lane reduce).
        pos_scores = jnp.sum(ctx * tgt3, axis=-1)   # (TB, C)
        neg_scores = jnp.sum(neg * tgt3, axis=-1)   # (TB, N)

        # logsigmoid of +scores for context, -scores for negatives
        # (avoids negating the whole (TB, N, D) tile).
        pos_ls = _log_sigmoid(pos_scores)            # (TB, C)
        neg_ls = _log_sigmoid(-neg_scores)           # (TB, N)

        # Exact mask for the partial edge block (inputs are NOT padded in HBM,
        # so out-of-bounds rows hold undefined data).  A select — not a
        # multiply — so NaN/Inf garbage can never leak into the reduction.
        base = pl.program_id(0) * tb
        row_ids = base + lax.broadcasted_iota(jnp.int32, (tb, 1), 0)  # (TB, 1)
        valid = row_ids < true_b                                      # (TB, 1) bool

        pos_sum = jnp.sum(jnp.where(valid, pos_ls, 0.0))
        neg_sum = jnp.sum(jnp.where(valid, neg_ls, 0.0))

        # Columns of the original (C,C)/(N,N) score matrices are identical,
        # so the full sums are just C / N times the per-row sums.
        block_loss = -(c * pos_sum + n * neg_sum)
        out_ref[...] = jnp.reshape(block_loss, (1, 1, 1))

    return kernel


@functools.partial(jax.jit, static_argnames=("tb_max",))
def nsloss(context, negative_samples, target, *, tb_max=None):
    B, C, D = context.shape
    N = negative_samples.shape[1]
    itemsize = jnp.dtype(context.dtype).itemsize

    # TODO(synk): add an inner ("arbitrary") C/N grid axis with a VMEM scratch
    # accumulator for shapes where even TB=8 rows exceed the VMEM budget
    # (mainly relevant on v7x's 64 MiB VMEM with very large C/N/D).
    TB = _choose_tb(B, C, N, D, itemsize, tb_max)
    num_blocks = pl.cdiv(B, TB)        # no wrapper-side padding — partial edge
                                       # block is masked inside the kernel

    cost = pl.CostEstimate(
        flops=2 * B * (C + N) * D,
        transcendentals=2 * B * (C + N),
        bytes_accessed=(context.size + negative_samples.size + target.size) * itemsize
        + num_blocks * 4,
    )

    partials = pl.pallas_call(
        _make_nsloss_kernel(B, TB, C, N),
        out_shape=jax.ShapeDtypeStruct((num_blocks, 1, 1), jnp.float32),
        grid_spec=pltpu.PrefetchScalarGridSpec(
            num_scalar_prefetch=0,
            grid=(num_blocks,),
            in_specs=[
                pl.BlockSpec((TB, C, D), lambda i: (i, 0, 0)),
                pl.BlockSpec((TB, N, D), lambda i: (i, 0, 0)),
                pl.BlockSpec((TB, D), lambda i: (i, 0)),
            ],
            out_specs=pl.BlockSpec((1, 1, 1), lambda i: (i, 0, 0)),
        ),
        compiler_params=pltpu.CompilerParams(
            # Independent partial sums -> batch axis can shard across TCs.
            dimension_semantics=("parallel",),
            # Tile selection keeps buffers under ~36 MiB; 48 MiB scoped limit is
            # safe on v7x (64 MiB physical) and below v5e/v6e's 128 MiB.
            vmem_limit_bytes=_VMEM_LIMIT_BYTES,
        ),
        cost_estimate=cost,
    )(context, negative_samples, target)

    return jnp.sum(partials)


def nsloss_ref(context, negative_samples, target):
    B, C, D = context.shape
    N = negative_samples.shape[1]
    tv_c = jnp.broadcast_to(target[:, None, :], (B, C, D))
    tv_n = jnp.broadcast_to(target[:, None, :], (B, N, D))
    pos = jnp.sum(jax.nn.log_sigmoid(jnp.einsum("bcd,bed->bce", context, tv_c)))
    neg = jnp.sum(jax.nn.log_sigmoid(jnp.einsum("bnd,bed->bne", -negative_samples, tv_n)))
    return -(pos + neg)


if __name__ == "__main__":
    key = jax.random.PRNGKey(0)
    k1, k2, k3 = jax.random.split(key, 3)

    # batch, #context vecs, #negative samples, embed dim
    B, C, N, D = 2, 8, 16, 128
    context = jax.random.normal(k1, (B, C, D), dtype=jnp.float32)
    negative_samples = jax.random.normal(k2, (B, N, D), dtype=jnp.float32)
    target = jax.random.normal(k3, (B, D), dtype=jnp.float32)

    loss = jax.block_until_ready(nsloss(context, negative_samples, target))
    ref = jax.block_until_ready(nsloss_ref(context, negative_samples, target))
    assert jnp.isfinite(loss), "non-finite loss"
    assert jnp.allclose(loss, ref, rtol=1e-4, atol=1e-3), (loss, ref)

    # Second check: multiple grid blocks + masked (unpadded) final edge block.
    B2 = 20
    k4, k5, k6 = jax.random.split(jax.random.PRNGKey(1), 3)
    context2 = jax.random.normal(k4, (B2, C, D), dtype=jnp.float32)
    negative_samples2 = jax.random.normal(k5, (B2, N, D), dtype=jnp.float32)
    target2 = jax.random.normal(k6, (B2, D), dtype=jnp.float32)

    loss2 = jax.block_until_ready(
        nsloss(context2, negative_samples2, target2, tb_max=8)
    )
    ref2 = jax.block_until_ready(nsloss_ref(context2, negative_samples2, target2))
    assert jnp.isfinite(loss2), "non-finite loss (multi-block)"
    assert jnp.allclose(loss2, ref2, rtol=1e-4, atol=1e-3), (loss2, ref2)

    # Third check: bf16 inputs straight from HBM (halved DMA bytes), promoted
    # to f32 inside the kernel.  Reference computed in f32 on the same
    # bf16-quantized values.
    ctx_bf = context.astype(jnp.bfloat16)
    neg_bf = negative_samples.astype(jnp.bfloat16)
    tgt_bf = target.astype(jnp.bfloat16)
    loss3 = jax.block_until_ready(nsloss(ctx_bf, neg_bf, tgt_bf))
    ref3 = jax.block_until_ready(
        nsloss_ref(ctx_bf.astype(jnp.float32),
                   neg_bf.astype(jnp.float32),
                   tgt_bf.astype(jnp.float32))
    )
    assert jnp.isfinite(loss3), "non-finite loss (bf16)"
    assert jnp.allclose(loss3, ref3, rtol=2e-3, atol=1e-1), (loss3, ref3)

    print("KERNEL_OK")
</pallas_src>

<mosaic_0001>
module attributes {stable_mosaic.version = 11 : i64} {
  func.func @kernel(%arg0: i32, %arg1: memref<8x8x128xf32, #tpu.memory_space<vmem>>, %arg2: memref<8x16x128xf32, #tpu.memory_space<vmem>>, %arg3: memref<8x128xf32, #tpu.memory_space<vmem>>, %arg4: memref<1x1x1xf32, #tpu.memory_space<vmem>>) attributes {dimension_semantics = [#tpu.dimension_semantics<parallel>], iteration_bounds = array<i64: 1>, scalar_prefetch = 0 : i64, scratch_operands = 0 : i64, tpu.core_type = #tpu.core_type<tc>, window_params = [{transform_indices = @transform_0, window_bounds = array<i64: 8, 8, 128>}, {transform_indices = @transform_1, window_bounds = array<i64: 8, 16, 128>}, {transform_indices = @transform_2, window_bounds = array<i64: 8, 128>}, {transform_indices = @transform_3, window_bounds = array<i64: 1, 1, 1>}]} {
    %c0 = arith.constant 0 : index
    %c0_0 = arith.constant 0 : index
    %c0_1 = arith.constant 0 : index
    %0 = vector.load %arg1[%c0, %c0_0, %c0_1] : memref<8x8x128xf32, #tpu.memory_space<vmem>>, vector<8x8x128xf32>
    %c0_2 = arith.constant 0 : index
    %c0_3 = arith.constant 0 : index
    %c0_4 = arith.constant 0 : index
    %1 = vector.load %arg2[%c0_2, %c0_3, %c0_4] : memref<8x16x128xf32, #tpu.memory_space<vmem>>, vector<8x16x128xf32>
    %c0_5 = arith.constant 0 : index
    %c0_6 = arith.constant 0 : index
    %2 = vector.load %arg3[%c0_5, %c0_6] : memref<8x128xf32, #tpu.memory_space<vmem>>, vector<8x128xf32>
    %3 = vector.shape_cast %2 : vector<8x128xf32> to vector<8x1x128xf32>
    %4 = vector.broadcast %3 : vector<8x1x128xf32> to vector<8x8x128xf32>
    %5 = arith.mulf %0, %4 : vector<8x8x128xf32>
    %cst = arith.constant dense<0.000000e+00> : vector<8x8xf32>
    %6 = vector.multi_reduction <add>, %5, %cst [2] : vector<8x8x128xf32> to vector<8x8xf32>
    %7 = vector.broadcast %3 : vector<8x1x128xf32> to vector<8x16x128xf32>
    %8 = arith.mulf %1, %7 : vector<8x16x128xf32>
    %cst_7 = arith.constant dense<0.000000e+00> : vector<8x16xf32>
    %9 = vector.multi_reduction <add>, %8, %cst_7 [2] : vector<8x16x128xf32> to vector<8x16xf32>
    %cst_8 = arith.constant 0.000000e+00 : f32
    %10 = vector.broadcast %cst_8 : f32 to vector<8x8xf32>
    %11 = arith.minimumf %6, %10 : vector<8x8xf32>
    %12 = math.absf %6 : vector<8x8xf32>
    %cst_9 = arith.constant 0.000000e+00 : f32
    %13 = vector.broadcast %cst_9 : f32 to vector<8x8xf32>
    %14 = arith.subf %13, %12 : vector<8x8xf32>
    %15 = math.exp %14 : vector<8x8xf32>
    %16 = math.log1p %15 : vector<8x8xf32>
    %17 = arith.subf %11, %16 : vector<8x8xf32>
    %cst_10 = arith.constant 0.000000e+00 : f32
    %18 = vector.broadcast %cst_10 : f32 to vector<8x16xf32>
    %19 = arith.subf %18, %9 : vector<8x16xf32>
    %cst_11 = arith.constant 0.000000e+00 : f32
    %20 = vector.broadcast %cst_11 : f32 to vector<8x16xf32>
    %21 = arith.minimumf %19, %20 : vector<8x16xf32>
    %22 = math.absf %19 : vector<8x16xf32>
    %cst_12 = arith.constant 0.000000e+00 : f32
    %23 = vector.broadcast %cst_12 : f32 to vector<8x16xf32>
    %24 = arith.subf %23, %22 : vector<8x16xf32>
    %25 = math.exp %24 : vector<8x16xf32>
    %26 = math.log1p %25 : vector<8x16xf32>
    %27 = arith.subf %21, %26 : vector<8x16xf32>
    %c8_i32 = arith.constant 8 : i32
    %28 = arith.muli %arg0, %c8_i32 : i32
    %29 = tpu.iota {dimensions = array<i32: 0>} : vector<8x1xi32>
    %30 = vector.broadcast %28 : i32 to vector<8x1xi32>
    %31 = arith.addi %30, %29 : vector<8x1xi32>
    %c2_i32 = arith.constant 2 : i32
    %32 = vector.broadcast %c2_i32 : i32 to vector<8x1xi32>
    %33 = arith.cmpi slt, %31, %32 : vector<8x1xi32>
    %cst_13 = arith.constant 0.000000e+00 : f32
    %34 = vector.shape_cast %33 : vector<8x1xi1> to vector<8x1xi1>
    %35 = vector.broadcast %34 : vector<8x1xi1> to vector<8x8xi1>
    %36 = vector.broadcast %cst_13 : f32 to vector<8x8xf32>
    %37 = arith.select %35, %17, %36 : vector<8x8xi1>, vector<8x8xf32>
    %38 = vector.shape_cast %37 : vector<8x8xf32> to vector<1x8x8xf32>
    %cst_14 = arith.constant dense<0.000000e+00> : vector<1xf32>
    %39 = vector.multi_reduction <add>, %38, %cst_14 [1, 2] : vector<1x8x8xf32> to vector<1xf32>
    %40 = vector.shape_cast %39 : vector<1xf32> to vector<1x1x1xf32>
    %41 = vector.extract %40[0, 0, 0] : f32 from vector<1x1x1xf32>
    %cst_15 = arith.constant 0.000000e+00 : f32
    %42 = vector.shape_cast %33 : vector<8x1xi1> to vector<8x1xi1>
    %43 = vector.broadcast %42 : vector<8x1xi1> to vector<8x16xi1>
    %44 = vector.broadcast %cst_15 : f32 to vector<8x16xf32>
    %45 = arith.select %43, %27, %44 : vector<8x16xi1>, vector<8x16xf32>
    %46 = vector.shape_cast %45 : vector<8x16xf32> to vector<1x8x16xf32>
    %cst_16 = arith.constant dense<0.000000e+00> : vector<1xf32>
    %47 = vector.multi_reduction <add>, %46, %cst_16 [1, 2] : vector<1x8x16xf32> to vector<1xf32>
    %48 = vector.shape_cast %47 : vector<1xf32> to vector<1x1x1xf32>
    %49 = vector.extract %48[0, 0, 0] : f32 from vector<1x1x1xf32>
    %cst_17 = arith.constant 8.000000e+00 : f32
    %50 = arith.mulf %cst_17, %41 : f32
    %cst_18 = arith.constant 1.600000e+01 : f32
    %51 = arith.mulf %cst_18, %49 : f32
    %52 = arith.addf %50, %51 : f32
    %cst_19 = arith.constant 0.000000e+00 : f32
    %53 = arith.subf %cst_19, %52 : f32
    %54 = vector.broadcast %53 : f32 to vector<1x1x1xf32>
    %c0_20 = arith.constant 0 : index
    %c0_21 = arith.constant 0 : index
    %c0_22 = arith.constant 0 : index
    %55 = vector.load %arg4[%c0_20, %c0_21, %c0_22] : memref<1x1x1xf32, #tpu.memory_space<vmem>>, vector<1x1x1xf32>
    tpu.vector_store %arg4[%c0_20, %c0_21, %c0_22], %54 {strides = array<i32>} : memref<1x1x1xf32, #tpu.memory_space<vmem>>, vector<1x1x1xf32>,
    return
  }
  func.func @transform_0(%arg0: i32) -> (i32, i32, i32) {
    %c0_i32 = arith.constant 0 : i32
    %c0_i32_0 = arith.constant 0 : i32
    %c0_i32_1 = arith.constant 0 : i32
    return %arg0, %c0_i32, %c0_i32_0 : i32, i32, i32
  }
  func.func @transform_1(%arg0: i32) -> (i32, i32, i32) {
    %c0_i32 = arith.constant 0 : i32
    %c0_i32_0 = arith.constant 0 : i32
    %c0_i32_1 = arith.constant 0 : i32
    return %arg0, %c0_i32, %c0_i32_0 : i32, i32, i32
  }
  func.func @transform_2(%arg0: i32) -> (i32, i32) {
    %c0_i32 = arith.constant 0 : i32
    %c0_i32_0 = arith.constant 0 : i32
    return %arg0, %c0_i32 : i32, i32
  }
  func.func @transform_3(%arg0: i32) -> (i32, i32, i32) {
    %c0_i32 = arith.constant 0 : i32
    %c0_i32_0 = arith.constant 0 : i32
    %c0_i32_1 = arith.constant 0 : i32
    return %arg0, %c0_i32, %c0_i32_0 : i32, i32, i32
  }
}

</mosaic_0001>

<llo_original>
// kernel: nsloss.1
$region0: #{nsloss.1}
  #allocation0 [shape = 'u32[]', space=smem, size = 0x4, offset = 0x4, fixed_abs, tag = 'smem constant byte address 0x4 - core index']
  #allocation1 [shape = 'u32[144,128]{1,0:T(1,128)}', space=vmem, size = 0x12000, scoped, tag = 'internal scratch']
  %s0 = inlined_call_operand.hbm [shape: f32[2,8,128], index: 0, kind: input, shape index: {}]
  %s1 = inlined_call_operand.hbm [shape: f32[2,16,128], index: 1, kind: input, shape index: {}]
  %s2 = inlined_call_operand.vmem [shape: f32[2,128], index: 2, kind: input, shape index: {}]
  %s3 = inlined_call_operand.hbm [shape: f32[1,1,1], index: 3, kind: output, shape index: {}]
  %s4 = sld [smem:[#allocation0]]
  $region30: #{nsloss.1} parent=0
    _
  %s6 = ssub.s32 1, %s4
  %s7 = scalar_select 0, %s6, %s4
  $region1: #{nsloss.1} parent=0
    #allocation2 [shape = 'u8[32768]{0}', space=vmem, size = 0x8000, scoped, tag = 'input window, operand 0, single buffered']
    #allocation3 [shape = 's32[1]{0}', space=sflag, size = 0x4, scoped, tag = 'scoped memory for nsloss.1']
    #allocation4 [shape = 's32[1]{0}', space=sflag, size = 0x4, scoped, tag = 'scoped memory for nsloss.1']
    #allocation5 [shape = 'u8[65536]{0}', space=vmem, size = 0x10000, scoped, tag = 'input window, operand 1, single buffered']
    #allocation6 [shape = 's32[1]{0}', space=sflag, size = 0x4, scoped, tag = 'scoped memory for nsloss.1']
    #allocation7 [shape = 'u8[512]{0}', space=vmem, size = 0x400, scoped, tag = 'output window, operand 0, single buffered']
    %8 = vsyncpa [#allocation3], 0
    %9 = vsyncpa [#allocation6], 0
    %10 = vsyncpa [#allocation4], 0
    // Predicated region
    $region2: #{nsloss.1} parent=1 // pred_check
      _
    $region3: #{nsloss.1} parent=1 // pred_check_branch
      %12 = sbr.rel (0) target = $region5
    $region4: #{nsloss.1} parent=1 // pred_region
      %s14 = ssub.s32 1024, 256
      %15 = vsyncadd [#allocation3], %s14
      %s16 = sshll.u32 [#allocation2], 4
      %s17 = int_to_ptr.vmem [resolvable:$true] %s16
      %22 = dma.hbm_to_vmem [thread:$0]  %s0, 256, %s17, [#allocation3], 128, 128, 8
    $region5: #{nsloss.1} parent=1 // pred_fallthru
      _
    // Predicated region
    $region6: #{nsloss.1} parent=1 // pred_check
      _
    $region7: #{nsloss.1} parent=1 // pred_check_branch
      %24 = sbr.rel (0) target = $region9
    $region8: #{nsloss.1} parent=1 // pred_region
      %s26 = ssub.s32 2048, 512
      %27 = vsyncadd [#allocation6], %s26
      %s28 = sshll.u32 [#allocation5], 4
      %s29 = int_to_ptr.vmem [resolvable:$true] %s28
      %34 = dma.hbm_to_vmem [thread:$0]  %s1, 512, %s29, [#allocation6], 128, 128, 8
    $region9: #{nsloss.1} parent=1 // pred_fallthru
      _
    // Predicated region
    $region10: #{nsloss.1} parent=1 // pred_check
      _
    $region11: #{nsloss.1} parent=1 // pred_check_branch
      %36 = sbr.rel (0) target = $region13
    $region12: #{nsloss.1} parent=1 // pred_region
      _
    $region13: #{nsloss.1} parent=1 // pred_fallthru
      _
    // Predicated region
    $region14: #{nsloss.1} parent=1 // pred_check
      _
    $region15: #{nsloss.1} parent=1 // pred_check_branch
      %38 = sbr.rel (0) target = $region17
    $region16: #{nsloss.1} parent=1 // pred_region
      %39 = dma.done [#allocation3], 1024
    $region17: #{nsloss.1} parent=1 // pred_fallthru
      _
    // Predicated region
    $region18: #{nsloss.1} parent=1 // pred_check
      _
    $region19: #{nsloss.1} parent=1 // pred_check_branch
      %41 = sbr.rel (0) target = $region21
    $region20: #{nsloss.1} parent=1 // pred_region
      %42 = dma.done [#allocation6], 2048
    $region21: #{nsloss.1} parent=1 // pred_fallthru
      _
    %v43 = vld [vmem:[#allocation2] sm:$0xff]
    %v44 = vld [vmem:[#allocation2 + $0x8] sm:$0xff]
    %v45 = vld [vmem:[#allocation2 + $0x10] sm:$0xff]
    %v46 = vld [vmem:[#allocation2 + $0x18] sm:$0xff]
    %v47 = vld [vmem:[#allocation2 + $0x20] sm:$0xff]
    %v48 = vld [vmem:[#allocation2 + $0x28] sm:$0xff]
    %v49 = vld [vmem:[#allocation2 + $0x30] sm:$0xff]
    %v50 = vld [vmem:[#allocation2 + $0x38] sm:$0xff]
    %v51 = vld [vmem:[#allocation5] sm:$0xff]
    %v52 = vld [vmem:[#allocation5 + $0x8] sm:$0xff]
    %v53 = vld [vmem:[#allocation5 + $0x10] sm:$0xff]
    %v54 = vld [vmem:[#allocation5 + $0x18] sm:$0xff]
    %v55 = vld [vmem:[#allocation5 + $0x20] sm:$0xff]
    %v56 = vld [vmem:[#allocation5 + $0x28] sm:$0xff]
    %v57 = vld [vmem:[#allocation5 + $0x30] sm:$0xff]
    %v58 = vld [vmem:[#allocation5 + $0x38] sm:$0xff]
    %v59 = vld [vmem:[#allocation5 + $0x40] sm:$0xff]
    %v60 = vld [vmem:[#allocation5 + $0x48] sm:$0xff]
    %v61 = vld [vmem:[#allocation5 + $0x50] sm:$0xff]
    %v62 = vld [vmem:[#allocation5 + $0x58] sm:$0xff]
    %v63 = vld [vmem:[#allocation5 + $0x60] sm:$0xff]
    %v64 = vld [vmem:[#allocation5 + $0x68] sm:$0xff]
    %v65 = vld [vmem:[#allocation5 + $0x70] sm:$0xff]
    %v66 = vld [vmem:[#allocation5 + $0x78] sm:$0xff]
    %v67 = vld [vmem:[%s2] sm:$0xff]
    %v69 = vcombine.high %v67, %v67
    %v71 = vunpack.c.l.s4 1966171168
    %v72 = vunpack.c.0.s8 %v71
    %v73 = vlaneseq
    %v74 = vshrl.u32 %v73, 7
    %v75 = vsub.s32 %v72, %v74
    %v76 = vrot.slane %v67, %v75
    %v78 = vunpack.c.l.s4 1966171168
    %v79 = vunpack.c.0.s8 %v78
    %v80 = vlaneseq
    %v81 = vshrl.u32 %v80, 7
    %v82 = vsub.s32 %v79, %v81
    %v83 = vrot.slane %v69, %v82
    %v84 = vcombine.high %v76, %v76
    %v85 = vcombine.high %v83, %v83
    %v87 = vunpack.c.l.s4 1966171168
    %v88 = vunpack.c.0.s8 %v87
    %v89 = vlaneseq
    %v90 = vshrl.u32 %v89, 7
    %v91 = vsub.s32 %v88, %v90
    %v92 = vrot.slane %v76, %v91
    %v94 = vunpack.c.l.s4 1966171168
    %v95 = vunpack.c.0.s8 %v94
    %v96 = vlaneseq
    %v97 = vshrl.u32 %v96, 7
    %v98 = vsub.s32 %v95, %v97
    %v99 = vrot.slane %v83, %v98
    %v101 = vunpack.c.l.s4 1966171168
    %v102 = vunpack.c.0.s8 %v101
    %v103 = vlaneseq
    %v104 = vshrl.u32 %v103, 7
    %v105 = vsub.s32 %v102, %v104
    %v106 = vrot.slane %v84, %v105
    %v108 = vunpack.c.l.s4 1966171168
    %v109 = vunpack.c.0.s8 %v108
    %v110 = vlaneseq
    %v111 = vshrl.u32 %v110, 7
    %v112 = vsub.s32 %v109, %v111
    %v113 = vrot.slane %v85, %v112
    %v114 = vcombine.high %v92, %v92
    %v115 = vcombine.high %v99, %v99
    %v116 = vcombine.high %v106, %v106
    %v117 = vcombine.high %v113, %v113
    %v118 = vlaneseq
    %v119 = vshrl.u32 %v118, 7
    %v120 = vsub.s32 0, %v119
    %v121 = vrot.slane %v92, %v120
    %v122 = vlaneseq
    %v123 = vshrl.u32 %v122, 7
    %v124 = vsub.s32 0, %v123
    %v125 = vrot.slane %v106, %v124
    %v126 = vlaneseq
    %v127 = vshrl.u32 %v126, 7
    %v128 = vsub.s32 0, %v127
    %v129 = vrot.slane %v114, %v128
    %v130 = vlaneseq
    %v131 = vshrl.u32 %v130, 7
    %v132 = vsub.s32 0, %v131
    %v133 = vrot.slane %v116, %v132
    %v134 = vlaneseq
    %v135 = vshrl.u32 %v134, 7
    %v136 = vsub.s32 0, %v135
    %v137 = vrot.slane %v99, %v136
    %v138 = vlaneseq
    %v139 = vshrl.u32 %v138, 7
    %v140 = vsub.s32 0, %v139
    %v141 = vrot.slane %v113, %v140
    %v142 = vlaneseq
    %v143 = vshrl.u32 %v142, 7
    %v144 = vsub.s32 0, %v143
    %v145 = vrot.slane %v115, %v144
    %v146 = vlaneseq
    %v147 = vshrl.u32 %v146, 7
    %v148 = vsub.s32 0, %v147
    %v149 = vrot.slane %v117, %v148
    %v158 = vmul.f32 %v43, %v121
    %v159 = vmul.f32 %v44, %v125
    %v160 = vmul.f32 %v45, %v129
    %v161 = vmul.f32 %v46, %v133
    %v162 = vmul.f32 %v47, %v137
    %v163 = vmul.f32 %v48, %v141
    %v164 = vmul.f32 %v49, %v145
    %v165 = vmul.f32 %v50, %v149
    %166 = vadd.xlane.f32.xlu0 %v158
    %v167 = vpop.xlane.xlu0 %166
    %168 = vadd.xlane.f32.xlu0 %v159
    %v169 = vpop.xlane.xlu0 %168
    %170 = vadd.xlane.f32.xlu0 %v160
    %v171 = vpop.xlane.xlu0 %170
    %172 = vadd.xlane.f32.xlu0 %v161
    %v173 = vpop.xlane.xlu0 %172
    %174 = vadd.xlane.f32.xlu0 %v162
    %v175 = vpop.xlane.xlu0 %174
    %176 = vadd.xlane.f32.xlu0 %v163
    %v177 = vpop.xlane.xlu0 %176
    %178 = vadd.xlane.f32.xlu0 %v164
    %v179 = vpop.xlane.xlu0 %178
    %180 = vadd.xlane.f32.xlu0 %v165
    %v181 = vpop.xlane.xlu0 %180
    %v182 = vmul.f32 %v51, %v121
    %v183 = vmul.f32 %v52, %v121
    %v184 = vmul.f32 %v53, %v125
    %v185 = vmul.f32 %v54, %v125
    %v186 = vmul.f32 %v55, %v129
    %v187 = vmul.f32 %v56, %v129
    %v188 = vmul.f32 %v57, %v133
    %v189 = vmul.f32 %v58, %v133
    %v190 = vmul.f32 %v59, %v137
    %v191 = vmul.f32 %v60, %v137
    %v192 = vmul.f32 %v61, %v141
    %v193 = vmul.f32 %v62, %v141
    %v194 = vmul.f32 %v63, %v145
    %v195 = vmul.f32 %v64, %v145
    %v196 = vmul.f32 %v65, %v149
    %v197 = vmul.f32 %v66, %v149
    %198 = vadd.xlane.f32.xlu0 %v182
    %v199 = vpop.xlane.xlu0 %198
    %200 = vadd.xlane.f32.xlu0 %v183
    %v201 = vpop.xlane.xlu0 %200
    %202 = vadd.xlane.f32.xlu0 %v184
    %v203 = vpop.xlane.xlu0 %202
    %204 = vadd.xlane.f32.xlu0 %v185
    %v205 = vpop.xlane.xlu0 %204
    %206 = vadd.xlane.f32.xlu0 %v186
    %v207 = vpop.xlane.xlu0 %206
    %208 = vadd.xlane.f32.xlu0 %v187
    %v209 = vpop.xlane.xlu0 %208
    %210 = vadd.xlane.f32.xlu0 %v188
    %v211 = vpop.xlane.xlu0 %210
    %212 = vadd.xlane.f32.xlu0 %v189
    %v213 = vpop.xlane.xlu0 %212
    %214 = vadd.xlane.f32.xlu0 %v190
    %v215 = vpop.xlane.xlu0 %214
    %216 = vadd.xlane.f32.xlu0 %v191
    %v217 = vpop.xlane.xlu0 %216
    %218 = vadd.xlane.f32.xlu0 %v192
    %v219 = vpop.xlane.xlu0 %218
    %220 = vadd.xlane.f32.xlu0 %v193
    %v221 = vpop.xlane.xlu0 %220
    %222 = vadd.xlane.f32.xlu0 %v194
    %v223 = vpop.xlane.xlu0 %222
    %224 = vadd.xlane.f32.xlu0 %v195
    %v225 = vpop.xlane.xlu0 %224
    %226 = vadd.xlane.f32.xlu0 %v196
    %v227 = vpop.xlane.xlu0 %226
    %228 = vadd.xlane.f32.xlu0 %v197
    %v229 = vpop.xlane.xlu0 %228
    %v230 = vmin.f32 %v167, 0.0
    %v231 = vmin.f32 %v169, 0.0
    %v232 = vmin.f32 %v171, 0.0
    %v233 = vmin.f32 %v173, 0.0
    %v234 = vmin.f32 %v175, 0.0
    %v235 = vmin.f32 %v177, 0.0
    %v236 = vmin.f32 %v179, 0.0
    %v237 = vmin.f32 %v181, 0.0
    %v238 = vand.u32 2147483647, %v167
    %v239 = vand.u32 2147483647, %v169
    %v240 = vand.u32 2147483647, %v171
    %v241 = vand.u32 2147483647, %v173
    %v242 = vand.u32 2147483647, %v175
    %v243 = vand.u32 2147483647, %v177
    %v244 = vand.u32 2147483647, %v179
    %v245 = vand.u32 2147483647, %v181
    %v246 = vsub.f32 0.0, %v238
    %v247 = vsub.f32 0.0, %v239
    %v248 = vsub.f32 0.0, %v240
    %v249 = vsub.f32 0.0, %v241
    %v250 = vsub.f32 0.0, %v242
    %v251 = vsub.f32 0.0, %v243
    %v252 = vsub.f32 0.0, %v244
    %v253 = vsub.f32 0.0, %v245
    %v254 = vmul.f32 %v246, 1.442695
    %v255 = vpow.pop %v254
    %v256 = vmul.f32 %v247, 1.442695
    %v257 = vpow.pop %v256
    %v258 = vmul.f32 %v248, 1.442695
    %v259 = vpow.pop %v258
    %v260 = vmul.f32 %v249, 1.442695
    %v261 = vpow.pop %v260
    %v262 = vmul.f32 %v250, 1.442695
    %v263 = vpow.pop %v262
    %v264 = vmul.f32 %v251, 1.442695
    %v265 = vpow.pop %v264
    %v266 = vmul.f32 %v252, 1.442695
    %v267 = vpow.pop %v266
    %v268 = vmul.f32 %v253, 1.442695
    %v269 = vpow.pop %v268
    %v270 = vadd.f32 %v255, 1.0
    %v271 = vlog2.pop %v270
    %v272 = vmul.f32 %v271, 0.6931472
    %v273 = vmul.f32 -0.5, %v255
    %v274 = vadd.f32 %v273, 1.0
    %v275 = vmul.f32 %v274, %v255
    %v276 = vand.u32 2147483647, %v255
    %vm277 = vcmp.lt.f32.partialorder %v276, 0.0004427343
    %v278 = vsel %vm277, %v275, %v272
    %v279 = vadd.f32 %v257, 1.0
    %v280 = vlog2.pop %v279
    %v281 = vmul.f32 %v280, 0.6931472
    %v282 = vmul.f32 -0.5, %v257
    %v283 = vadd.f32 %v282, 1.0
    %v284 = vmul.f32 %v283, %v257
    %v285 = vand.u32 2147483647, %v257
    %vm286 = vcmp.lt.f32.partialorder %v285, 0.0004427343
    %v287 = vsel %vm286, %v284, %v281
    %v288 = vadd.f32 %v259, 1.0
    %v289 = vlog2.pop %v288
    %v290 = vmul.f32 %v289, 0.6931472
    %v291 = vmul.f32 -0.5, %v259
    %v292 = vadd.f32 %v291, 1.0
    %v293 = vmul.f32 %v292, %v259
    %v294 = vand.u32 2147483647, %v259
    %vm295 = vcmp.lt.f32.partialorder %v294, 0.0004427343
    %v296 = vsel %vm295, %v293, %v290
    %v297 = vadd.f32 %v261, 1.0
    %v298 = vlog2.pop %v297
    %v299 = vmul.f32 %v298, 0.6931472
    %v300 = vmul.f32 -0.5, %v261
    %v301 = vadd.f32 %v300, 1.0
    %v302 = vmul.f32 %v301, %v261
    %v303 = vand.u32 2147483647, %v261
    %vm304 = vcmp.lt.f32.partialorder %v303, 0.0004427343
    %v305 = vsel %vm304, %v302, %v299
    %v306 = vadd.f32 %v263, 1.0
    %v307 = vlog2.pop %v306
    %v308 = vmul.f32 %v307, 0.6931472
    %v309 = vmul.f32 -0.5, %v263
    %v310 = vadd.f32 %v309, 1.0
    %v311 = vmul.f32 %v310, %v263
    %v312 = vand.u32 2147483647, %v263
    %vm313 = vcmp.lt.f32.partialorder %v312, 0.0004427343
    %v314 = vsel %vm313, %v311, %v308
    %v315 = vadd.f32 %v265, 1.0
    %v316 = vlog2.pop %v315
    %v317 = vmul.f32 %v316, 0.6931472
    %v318 = vmul.f32 -0.5, %v265
    %v319 = vadd.f32 %v318, 1.0
    %v320 = vmul.f32 %v319, %v265
    %v321 = vand.u32 2147483647, %v265
    %vm322 = vcmp.lt.f32.partialorder %v321, 0.0004427343
    %v323 = vsel %vm322, %v320, %v317
    %v324 = vadd.f32 %v267, 1.0
    %v325 = vlog2.pop %v324
    %v326 = vmul.f32 %v325, 0.6931472
    %v327 = vmul.f32 -0.5, %v267
    %v328 = vadd.f32 %v327, 1.0
    %v329 = vmul.f32 %v328, %v267
    %v330 = vand.u32 2147483647, %v267
    %vm331 = vcmp.lt.f32.partialorder %v330, 0.0004427343
    %v332 = vsel %vm331, %v329, %v326
    %v333 = vadd.f32 %v269, 1.0
    %v334 = vlog2.pop %v333
    %v335 = vmul.f32 %v334, 0.6931472
    %v336 = vmul.f32 -0.5, %v269
    %v337 = vadd.f32 %v336, 1.0
    %v338 = vmul.f32 %v337, %v269
    %v339 = vand.u32 2147483647, %v269
    %vm340 = vcmp.lt.f32.partialorder %v339, 0.0004427343
    %v341 = vsel %vm340, %v338, %v335
    %v342 = vsub.f32 %v230, %v278
    %v343 = vsub.f32 %v231, %v287
    %v344 = vsub.f32 %v232, %v296
    %v345 = vsub.f32 %v233, %v305
    %v346 = vsub.f32 %v234, %v314
    %v347 = vsub.f32 %v235, %v323
    %v348 = vsub.f32 %v236, %v332
    %v349 = vsub.f32 %v237, %v341
    %v350 = vsub.f32 0.0, %v199
    %v351 = vsub.f32 0.0, %v201
    %v352 = vsub.f32 0.0, %v203
    %v353 = vsub.f32 0.0, %v205
    %v354 = vsub.f32 0.0, %v207
    %v355 = vsub.f32 0.0, %v209
    %v356 = vsub.f32 0.0, %v211
    %v357 = vsub.f32 0.0, %v213
    %v358 = vsub.f32 0.0, %v215
    %v359 = vsub.f32 0.0, %v217
    %v360 = vsub.f32 0.0, %v219
    %v361 = vsub.f32 0.0, %v221
    %v362 = vsub.f32 0.0, %v223
    %v363 = vsub.f32 0.0, %v225
    %v364 = vsub.f32 0.0, %v227
    %v365 = vsub.f32 0.0, %v229
    %v366 = vmin.f32 %v350, 0.0
    %v367 = vmin.f32 %v351, 0.0
    %v368 = vmin.f32 %v352, 0.0
    %v369 = vmin.f32 %v353, 0.0
    %v370 = vmin.f32 %v354, 0.0
    %v371 = vmin.f32 %v355, 0.0
    %v372 = vmin.f32 %v356, 0.0
    %v373 = vmin.f32 %v357, 0.0
    %v374 = vmin.f32 %v358, 0.0
    %v375 = vmin.f32 %v359, 0.0
    %v376 = vmin.f32 %v360, 0.0
    %v377 = vmin.f32 %v361, 0.0
    %v378 = vmin.f32 %v362, 0.0
    %v379 = vmin.f32 %v363, 0.0
    %v380 = vmin.f32 %v364, 0.0
    %v381 = vmin.f32 %v365, 0.0
    %v382 = vand.u32 2147483647, %v350
    %v383 = vand.u32 2147483647, %v351
    %v384 = vand.u32 2147483647, %v352
    %v385 = vand.u32 2147483647, %v353
    %v386 = vand.u32 2147483647, %v354
    %v387 = vand.u32 2147483647, %v355
    %v388 = vand.u32 2147483647, %v356
    %v389 = vand.u32 2147483647, %v357
    %v390 = vand.u32 2147483647, %v358
    %v391 = vand.u32 2147483647, %v359
    %v392 = vand.u32 2147483647, %v360
    %v393 = vand.u32 2147483647, %v361
    %v394 = vand.u32 2147483647, %v362
    %v395 = vand.u32 2147483647, %v363
    %v396 = vand.u32 2147483647, %v364
    %v397 = vand.u32 2147483647, %v365
    %v398 = vsub.f32 0.0, %v382
    %v399 = vsub.f32 0.0, %v383
    %v400 = vsub.f32 0.0, %v384
    %v401 = vsub.f32 0.0, %v385
    %v402 = vsub.f32 0.0, %v386
    %v403 = vsub.f32 0.0, %v387
    %v404 = vsub.f32 0.0, %v388
    %v405 = vsub.f32 0.0, %v389
    %v406 = vsub.f32 0.0, %v390
    %v407 = vsub.f32 0.0, %v391
    %v408 = vsub.f32 0.0, %v392
    %v409 = vsub.f32 0.0, %v393
    %v410 = vsub.f32 0.0, %v394
    %v411 = vsub.f32 0.0, %v395
    %v412 = vsub.f32 0.0, %v396
    %v413 = vsub.f32 0.0, %v397
    %v414 = vmul.f32 %v398, 1.442695
    %v415 = vpow.pop %v414
    %v416 = vmul.f32 %v399, 1.442695
    %v417 = vpow.pop %v416
    %v418 = vmul.f32 %v400, 1.442695
    %v419 = vpow.pop %v418
    %v420 = vmul.f32 %v401, 1.442695
    %v421 = vpow.pop %v420
    %v422 = vmul.f32 %v402, 1.442695
    %v423 = vpow.pop %v422
    %v424 = vmul.f32 %v403, 1.442695
    %v425 = vpow.pop %v424
    %v426 = vmul.f32 %v404, 1.442695
    %v427 = vpow.pop %v426
    %v428 = vmul.f32 %v405, 1.442695
    %v429 = vpow.pop %v428
    %v430 = vmul.f32 %v406, 1.442695
    %v431 = vpow.pop %v430
    %v432 = vmul.f32 %v407, 1.442695
    %v433 = vpow.pop %v432
    %v434 = vmul.f32 %v408, 1.442695
    %v435 = vpow.pop %v434
    %v436 = vmul.f32 %v409, 1.442695
    %v437 = vpow.pop %v436
    %v438 = vmul.f32 %v410, 1.442695
    %v439 = vpow.pop %v438
    %v440 = vmul.f32 %v411, 1.442695
    %v441 = vpow.pop %v440
    %v442 = vmul.f32 %v412, 1.442695
    %v443 = vpow.pop %v442
    %v444 = vmul.f32 %v413, 1.442695
    %v445 = vpow.pop %v444
    %v446 = vadd.f32 %v415, 1.0
    %v447 = vlog2.pop %v446
    %v448 = vmul.f32 %v447, 0.6931472
    %v449 = vmul.f32 -0.5, %v415
    %v450 = vadd.f32 %v449, 1.0
    %v451 = vmul.f32 %v450, %v415
    %v452 = vand.u32 2147483647, %v415
    %vm453 = vcmp.lt.f32.partialorder %v452, 0.0004427343
    %v454 = vsel %vm453, %v451, %v448
    %v455 = vadd.f32 %v417, 1.0
    %v456 = vlog2.pop %v455
    %v457 = vmul.f32 %v456, 0.6931472
    %v458 = vmul.f32 -0.5, %v417
    %v459 = vadd.f32 %v458, 1.0
    %v460 = vmul.f32 %v459, %v417
    %v461 = vand.u32 2147483647, %v417
    %vm462 = vcmp.lt.f32.partialorder %v461, 0.0004427343
    %v463 = vsel %vm462, %v460, %v457
    %v464 = vadd.f32 %v419, 1.0
    %v465 = vlog2.pop %v464
    %v466 = vmul.f32 %v465, 0.6931472
    %v467 = vmul.f32 -0.5, %v419
    %v468 = vadd.f32 %v467, 1.0
    %v469 = vmul.f32 %v468, %v419
    %v470 = vand.u32 2147483647, %v419
    %vm471 = vcmp.lt.f32.partialorder %v470, 0.0004427343
    %v472 = vsel %vm471, %v469, %v466
    %v473 = vadd.f32 %v421, 1.0
    %v474 = vlog2.pop %v473
    %v475 = vmul.f32 %v474, 0.6931472
    %v476 = vmul.f32 -0.5, %v421
    %v477 = vadd.f32 %v476, 1.0
    %v478 = vmul.f32 %v477, %v421
    %v479 = vand.u32 2147483647, %v421
    %vm480 = vcmp.lt.f32.partialorder %v479, 0.0004427343
    %v481 = vsel %vm480, %v478, %v475
    %v482 = vadd.f32 %v423, 1.0
    %v483 = vlog2.pop %v482
    %v484 = vmul.f32 %v483, 0.6931472
    %v485 = vmul.f32 -0.5, %v423
    %v486 = vadd.f32 %v485, 1.0
    %v487 = vmul.f32 %v486, %v423
    %v488 = vand.u32 2147483647, %v423
    %vm489 = vcmp.lt.f32.partialorder %v488, 0.0004427343
    %v490 = vsel %vm489, %v487, %v484
    %v491 = vadd.f32 %v425, 1.0
    %v492 = vlog2.pop %v491
    %v493 = vmul.f32 %v492, 0.6931472
    %v494 = vmul.f32 -0.5, %v425
    %v495 = vadd.f32 %v494, 1.0
    %v496 = vmul.f32 %v495, %v425
    %v497 = vand.u32 2147483647, %v425
    %vm498 = vcmp.lt.f32.partialorder %v497, 0.0004427343
    %v499 = vsel %vm498, %v496, %v493
    %v500 = vadd.f32 %v427, 1.0
    %v501 = vlog2.pop %v500
    %v502 = vmul.f32 %v501, 0.6931472
    %v503 = vmul.f32 -0.5, %v427
    %v504 = vadd.f32 %v503, 1.0
    %v505 = vmul.f32 %v504, %v427
    %v506 = vand.u32 2147483647, %v427
    %vm507 = vcmp.lt.f32.partialorder %v506, 0.0004427343
    %v508 = vsel %vm507, %v505, %v502
    %v509 = vadd.f32 %v429, 1.0
    %v510 = vlog2.pop %v509
    %v511 = vmul.f32 %v510, 0.6931472
    %v512 = vmul.f32 -0.5, %v429
    %v513 = vadd.f32 %v512, 1.0
    %v514 = vmul.f32 %v513, %v429
    %v515 = vand.u32 2147483647, %v429
    %vm516 = vcmp.lt.f32.partialorder %v515, 0.0004427343
    %v517 = vsel %vm516, %v514, %v511
    %v518 = vadd.f32 %v431, 1.0
    %v519 = vlog2.pop %v518
    %v520 = vmul.f32 %v519, 0.6931472
    %v521 = vmul.f32 -0.5, %v431
    %v522 = vadd.f32 %v521, 1.0
    %v523 = vmul.f32 %v522, %v431
    %v524 = vand.u32 2147483647, %v431
    %vm525 = vcmp.lt.f32.partialorder %v524, 0.0004427343
    %v526 = vsel %vm525, %v523, %v520
    %v527 = vadd.f32 %v433, 1.0
    %v528 = vlog2.pop %v527
    %v529 = vmul.f32 %v528, 0.6931472
    %v530 = vmul.f32 -0.5, %v433
    %v531 = vadd.f32 %v530, 1.0
    %v532 = vmul.f32 %v531, %v433
    %v533 = vand.u32 2147483647, %v433
    %vm534 = vcmp.lt.f32.partialorder %v533, 0.0004427343
    %v535 = vsel %vm534, %v532, %v529
    %v536 = vadd.f32 %v435, 1.0
    %v537 = vlog2.pop %v536
    %v538 = vmul.f32 %v537, 0.6931472
    %v539 = vmul.f32 -0.5, %v435
    %v540 = vadd.f32 %v539, 1.0
    %v541 = vmul.f32 %v540, %v435
    %v542 = vand.u32 2147483647, %v435
    %vm543 = vcmp.lt.f32.partialorder %v542, 0.0004427343
    %v544 = vsel %vm543, %v541, %v538
    %v545 = vadd.f32 %v437, 1.0
    %v546 = vlog2.pop %v545
    %v547 = vmul.f32 %v546, 0.6931472
    %v548 = vmul.f32 -0.5, %v437
    %v549 = vadd.f32 %v548, 1.0
    %v550 = vmul.f32 %v549, %v437
    %v551 = vand.u32 2147483647, %v437
    %vm552 = vcmp.lt.f32.partialorder %v551, 0.0004427343
    %v553 = vsel %vm552, %v550, %v547
    %v554 = vadd.f32 %v439, 1.0
    %v555 = vlog2.pop %v554
    %v556 = vmul.f32 %v555, 0.6931472
    %v557 = vmul.f32 -0.5, %v439
    %v558 = vadd.f32 %v557, 1.0
    %v559 = vmul.f32 %v558, %v439
    %v560 = vand.u32 2147483647, %v439
    %vm561 = vcmp.lt.f32.partialorder %v560, 0.0004427343
    %v562 = vsel %vm561, %v559, %v556
    %v563 = vadd.f32 %v441, 1.0
    %v564 = vlog2.pop %v563
    %v565 = vmul.f32 %v564, 0.6931472
    %v566 = vmul.f32 -0.5, %v441
    %v567 = vadd.f32 %v566, 1.0
    %v568 = vmul.f32 %v567, %v441
    %v569 = vand.u32 2147483647, %v441
    %vm570 = vcmp.lt.f32.partialorder %v569, 0.0004427343
    %v571 = vsel %vm570, %v568, %v565
    %v572 = vadd.f32 %v443, 1.0
    %v573 = vlog2.pop %v572
    %v574 = vmul.f32 %v573, 0.6931472
    %v575 = vmul.f32 -0.5, %v443
    %v576 = vadd.f32 %v575, 1.0
    %v577 = vmul.f32 %v576, %v443
    %v578 = vand.u32 2147483647, %v443
    %vm579 = vcmp.lt.f32.partialorder %v578, 0.0004427343
    %v580 = vsel %vm579, %v577, %v574
    %v581 = vadd.f32 %v445, 1.0
    %v582 = vlog2.pop %v581
    %v583 = vmul.f32 %v582, 0.6931472
    %v584 = vmul.f32 -0.5, %v445
    %v585 = vadd.f32 %v584, 1.0
    %v586 = vmul.f32 %v585, %v445
    %v587 = vand.u32 2147483647, %v445
    %vm588 = vcmp.lt.f32.partialorder %v587, 0.0004427343
    %v589 = vsel %vm588, %v586, %v583
    %v590 = vsub.f32 %v366, %v454
    %v591 = vsub.f32 %v367, %v463
    %v592 = vsub.f32 %v368, %v472
    %v593 = vsub.f32 %v369, %v481
    %v594 = vsub.f32 %v370, %v490
    %v595 = vsub.f32 %v371, %v499
    %v596 = vsub.f32 %v372, %v508
    %v597 = vsub.f32 %v373, %v517
    %v598 = vsub.f32 %v374, %v526
    %v599 = vsub.f32 %v375, %v535
    %v600 = vsub.f32 %v376, %v544
    %v601 = vsub.f32 %v377, %v553
    %v602 = vsub.f32 %v378, %v562
    %v603 = vsub.f32 %v379, %v571
    %v604 = vsub.f32 %v380, %v580
    %v605 = vsub.f32 %v381, %v589
    %s606 = smul.u32 0, 8
    %v607 = vlaneseq
    %v608 = vshrl.u32 %v607, 7
    %v609 = vstv %s606
    %v610 = vadd.s32 %v609, %v608
    %vm611 = vcmp.lt.s32.totalorder %v610, 2
    %v612 = vsel %vm611, 1, 0
    %vm613 = vcmp.eq.s32.totalorder %v612, 1
    %v622 = vlaneseq
    %v623 = vand.u32 %v622, 127
    %v624 = vlaneseq
    %v625 = vshrl.u32 %v624, 7
    %v626 = vsub.s32 %v623, %v625
    %v627 = vrot.slane %v342, %v626
    %v628 = vlaneseq
    %v629 = vshrl.u32 %v628, 7
    %v630 = vsub.s32 %v623, %v629
    %v631 = vrot.slane %v343, %v630
    %v632 = vlaneseq
    %v633 = vshrl.u32 %v632, 7
    %v634 = vsub.s32 %v623, %v633
    %v635 = vrot.slane %v344, %v634
    %v636 = vlaneseq
    %v637 = vshrl.u32 %v636, 7
    %v638 = vsub.s32 %v623, %v637
    %v639 = vrot.slane %v345, %v638
    %v640 = vlaneseq
    %v641 = vshrl.u32 %v640, 7
    %v642 = vsub.s32 %v623, %v641
    %v643 = vrot.slane %v346, %v642
    %v644 = vlaneseq
    %v645 = vshrl.u32 %v644, 7
    %v646 = vsub.s32 %v623, %v645
    %v647 = vrot.slane %v347, %v646
    %v648 = vlaneseq
    %v649 = vshrl.u32 %v648, 7
    %v650 = vsub.s32 %v623, %v649
    %v651 = vrot.slane %v348, %v650
    %v652 = vlaneseq
    %v653 = vshrl.u32 %v652, 7
    %v654 = vsub.s32 %v623, %v653
    %v655 = vrot.slane %v349, %v654
    %vm656 = vcmask 1041409
    %v657 = vsel %vm656, %v631, %v627
    %vm658 = vcmask 1042434
    %v659 = vsel %vm658, %v635, %v657
    %vm660 = vcmask 1043459
    %v661 = vsel %vm660, %v639, %v659
    %vm662 = vcmask 1044484
    %v663 = vsel %vm662, %v643, %v661
    %vm664 = vcmask 1045509
    %v665 = vsel %vm664, %v647, %v663
    %vm666 = vcmask 1046534
    %v667 = vsel %vm666, %v651, %v665
    %vm668 = vcmask 1047559
    %v669 = vsel %vm668, %v655, %v667
    %v671 = vsel %vm613, %v669, 0.0
    %vm672 = vcmask 64512
    %v673 = vsel %vm672, %v671, 0.0
    %674 = vadd.xlane.f32.xlu0 %v673
    %v675 = vpop.xlane.xlu0 %674
    %v676 = vrot.slane %v675, 4
    %v677 = vadd.f32 %v675, %v676
    %v678 = vrot.slane %v677, 2
    %v679 = vadd.f32 %v677, %v678
    %v680 = vrot.slane %v679, 1
    %v681 = vadd.f32 %v679, %v680
    %s682 = vtos %v681
    %v699 = vlaneseq
    %v700 = vshrl.u32 %v699, 7
    %v701 = vsub.s32 %v623, %v700
    %v702 = vrot.slane %v590, %v701
    %v703 = vadd.s32 %v623, 4294967288
    %v704 = vlaneseq
    %v705 = vshrl.u32 %v704, 7
    %v706 = vsub.s32 %v703, %v705
    %v707 = vrot.slane %v591, %v706
    %vm708 = vcmask 130112
    %v709 = vsel %vm708, %v707, %v702
    %v710 = vlaneseq
    %v711 = vshrl.u32 %v710, 7
    %v712 = vsub.s32 %v623, %v711
    %v713 = vrot.slane %v592, %v712
    %v714 = vlaneseq
    %v715 = vshrl.u32 %v714, 7
    %v716 = vsub.s32 %v703, %v715
    %v717 = vrot.slane %v593, %v716
    %v718 = vsel %vm708, %v717, %v713
    %v719 = vlaneseq
    %v720 = vshrl.u32 %v719, 7
    %v721 = vsub.s32 %v623, %v720
    %v722 = vrot.slane %v594, %v721
    %v723 = vlaneseq
    %v724 = vshrl.u32 %v723, 7
    %v725 = vsub.s32 %v703, %v724
    %v726 = vrot.slane %v595, %v725
    %v727 = vsel %vm708, %v726, %v722
    %v728 = vlaneseq
    %v729 = vshrl.u32 %v728, 7
    %v730 = vsub.s32 %v623, %v729
    %v731 = vrot.slane %v596, %v730
    %v732 = vlaneseq
    %v733 = vshrl.u32 %v732, 7
    %v734 = vsub.s32 %v703, %v733
    %v735 = vrot.slane %v597, %v734
    %v736 = vsel %vm708, %v735, %v731
    %v737 = vlaneseq
    %v738 = vshrl.u32 %v737, 7
    %v739 = vsub.s32 %v623, %v738
    %v740 = vrot.slane %v598, %v739
    %v741 = vlaneseq
    %v742 = vshrl.u32 %v741, 7
    %v743 = vsub.s32 %v703, %v742
    %v744 = vrot.slane %v599, %v743
    %v745 = vsel %vm708, %v744, %v740
    %v746 = vlaneseq
    %v747 = vshrl.u32 %v746, 7
    %v748 = vsub.s32 %v623, %v747
    %v749 = vrot.slane %v600, %v748
    %v750 = vlaneseq
    %v751 = vshrl.u32 %v750, 7
    %v752 = vsub.s32 %v703, %v751
    %v753 = vrot.slane %v601, %v752
    %v754 = vsel %vm708, %v753, %v749
    %v755 = vlaneseq
    %v756 = vshrl.u32 %v755, 7
    %v757 = vsub.s32 %v623, %v756
    %v758 = vrot.slane %v602, %v757
    %v759 = vlaneseq
    %v760 = vshrl.u32 %v759, 7
    %v761 = vsub.s32 %v703, %v760
    %v762 = vrot.slane %v603, %v761
    %v763 = vsel %vm708, %v762, %v758
    %v764 = vlaneseq
    %v765 = vshrl.u32 %v764, 7
    %v766 = vsub.s32 %v623, %v765
    %v767 = vrot.slane %v604, %v766
    %v768 = vlaneseq
    %v769 = vshrl.u32 %v768, 7
    %v770 = vsub.s32 %v703, %v769
    %v771 = vrot.slane %v605, %v770
    %v772 = vsel %vm708, %v771, %v767
    %v773 = vsel %vm656, %v718, %v709
    %v774 = vsel %vm658, %v727, %v773
    %v775 = vsel %vm660, %v736, %v774
    %v776 = vsel %vm662, %v745, %v775
    %v777 = vsel %vm664, %v754, %v776
    %v778 = vsel %vm666, %v763, %v777
    %v779 = vsel %vm668, %v772, %v778
    %v781 = vsel %vm613, %v779, 0.0
    %vm782 = vcmask 130048
    %v783 = vsel %vm782, %v781, 0.0
    %784 = vadd.xlane.f32.xlu0 %v783
    %v785 = vpop.xlane.xlu0 %784
    %v786 = vrot.slane %v785, 4
    %v787 = vadd.f32 %v785, %v786
    %v788 = vrot.slane %v787, 2
    %v789 = vadd.f32 %v787, %v788
    %v790 = vrot.slane %v789, 1
    %v791 = vadd.f32 %v789, %v790
    %s792 = vtos %v791
    %s793 = smul.f32 %s682, 8.0
    %s794 = smul.f32 %s792, 16.0
    %s795 = sadd.f32 %s793, %s794
    %s796 = ssub.f32 0.0, %s795
    %v797 = vstv %s796
    %vm798 = vcmask 0
    %799 = vst.msk [vmem:[#allocation7] sm:$0x1] %vm798, %v797
    // Predicated region
    $region22: #{nsloss.1} parent=1 // pred_check
      _
    $region23: #{nsloss.1} parent=1 // pred_check_branch
      %801 = sbr.rel (0) target = $region25
    $region24: #{nsloss.1} parent=1 // pred_region
      %s803 = ssub.s32 16, 16
      %804 = vsyncadd [#allocation4], %s803
      %s806 = sshll.u32 [#allocation7], 4
      %s807 = int_to_ptr.vmem [resolvable:$true] %s806
      %809 = dma.vmem_to_hbm [thread:$0]  %s807, 16, %s3, [#allocation4]
    $region25: #{nsloss.1} parent=1 // pred_fallthru
      _
    // Predicated region
    $region26: #{nsloss.1} parent=1 // pred_check
      _
    $region27: #{nsloss.1} parent=1 // pred_check_branch
      %811 = sbr.rel (0) target = $region29
    $region28: #{nsloss.1} parent=1 // pred_region
      %812 = dma.done [#allocation4], 16
    $region29: #{nsloss.1} parent=1 // pred_fallthru
      _
    %813 = vsyncpa [#allocation3], 1
    %814 = vsyncpa [#allocation6], 1
    %815 = vsyncpa [#allocation4], 1

</llo_original>
